<compile_context>
chip_gen: v6e
topology: v6e:2x2x1
jax: 0.10.0
libtpu: 0.0.40
codegen_flags: <defaults>
</compile_context>

<pallas_src>
import jax
import jax.numpy as jnp
from jax.experimental import pallas as pl
from jax.experimental.pallas import tpu as pltpu


def agn_fwd_kernel(scal_ref, x_ref, a_ref, d_ref, wx_ref, out_ref, xh_ref):
    # x_ = self.x_layer(x)   (bias=False) — the only MXU matmul left.
    xh_ref[...] = jnp.dot(
        x_ref[...], wx_ref[...], preferred_element_type=jnp.float32
    ).astype(xh_ref.dtype)

    # out = self.fc_layer(cat(a_layer(a), d_layer(d)))   folded to
    #   out = a * s_a + d * s_d + b        (pure VPU FMA on lane-dense tiles;
    # no K=1 MXU outer products, no concat, no unaligned weight slice).
    s_a = scal_ref[0]
    s_d = scal_ref[1]
    b = scal_ref[2]
    out_ref[...] = a_ref[...] * s_a + d_ref[...] * s_d + b


def _round_up(v, m):
    return (v + m - 1) // m * m


def agn_forward(x, e, a, d, params, *, tm=None):
    """Fused AGNModel.forward (layer_num == 0).

    Returns (out, x_hidden). `out` matches PyTorch AGNModel.forward; `x_hidden`
    is the x_layer activation (dead when layer_num == 0, exposed since it is
    what AGNLayers would consume).
    """
    del e  # TODO(synk): e / e_layer are unused in AGNModel.forward.
    B, N, x_dim = x.shape
    wx, wa, wd, wfc, bfc = params
    H = wx.shape[1]
    half = H // 2
    M = B * N

    # Rank-1 fold of the a/d/fc path (exact algebra, computed once outside
    # the kernel, shipped to the kernel as three SMEM scalars).
    s_a = jnp.dot(wa[0], wfc[:half, 0])
    s_d = jnp.dot(wd[0], wfc[half:, 0])
    scal = jnp.stack([s_a, s_d, bfc[0]]).astype(jnp.float32)  # (3,)

    # Row tile: one grid step for small problems, otherwise a large tile
    # (512 rows ≈ a few tens of KB of VMEM per buffer at these widths, safe on
    # v5e/v6e and on v7x's smaller 64 MiB VMEM).
    if tm is None:
        tm = min(_round_up(M, 8), 512)
    M_pad = _round_up(M, tm)
    num_tiles = M_pad // tm

    # Zero-pad the row dimension (well-defined tail rows) and lay a/d/out
    # lane-dense: tm along the lane axis.
    x2 = jnp.zeros((M_pad, x_dim), jnp.float32).at[:M].set(
        x.reshape(M, x_dim).astype(jnp.float32))
    a3 = jnp.zeros((M_pad,), jnp.float32).at[:M].set(
        a.reshape(M).astype(jnp.float32)).reshape(num_tiles, 1, tm)
    d3 = jnp.zeros((M_pad,), jnp.float32).at[:M].set(
        d.reshape(M).astype(jnp.float32)).reshape(num_tiles, 1, tm)

    out, xh = pl.pallas_call(
        agn_fwd_kernel,
        out_shape=(
            jax.ShapeDtypeStruct((num_tiles, 1, tm), jnp.float32),  # out (lane-dense)
            jax.ShapeDtypeStruct((M_pad, H), jnp.float32),          # x_ hidden
        ),
        grid=(num_tiles,),
        in_specs=[
            pl.BlockSpec(memory_space=pltpu.MemorySpace.SMEM),      # folded scalars
            pl.BlockSpec((tm, x_dim), lambda i: (i, 0)),            # x rows
            pl.BlockSpec((1, 1, tm), lambda i: (i, 0, 0)),          # a rows (lane axis)
            pl.BlockSpec((1, 1, tm), lambda i: (i, 0, 0)),          # d rows (lane axis)
            pl.BlockSpec((x_dim, H), lambda i: (0, 0)),             # Wx^T (full, constant)
        ],
        out_specs=(
            pl.BlockSpec((1, 1, tm), lambda i: (i, 0, 0)),          # out (lane-dense)
            pl.BlockSpec((tm, H), lambda i: (i, 0)),                # x_ hidden rows
        ),
        compiler_params=pltpu.CompilerParams(
            dimension_semantics=("parallel",)),
    )(scal, x2, a3, d3, wx)

    out = out.reshape(M_pad)[:M].reshape(B, N, 1)
    xh = xh[:M].reshape(B, N, H)
    return out, xh


def ref_forward(x, e, a, d, params):
    del e
    wx, wa, wd, wfc, bfc = params
    x_ = x @ wx
    a_ = a[..., None] @ wa
    d_ = d[..., None] @ wd
    e_ = jnp.concatenate([a_, d_], axis=-1)
    out = e_ @ wfc + bfc
    return out, x_


if __name__ == "__main__":
    # args: x_dim=6, e_dim=4 (unused), agn_hidden_dim=12, layer_num=0
    X_DIM, E_DIM, H = 6, 4, 12

    key = jax.random.PRNGKey(0)
    kx, ke, ka, kd, kwx, kwa, kwd, kwf, kbf = jax.random.split(key, 9)

    # Deterministic parameters (weights stored as (in_features, out_features)).
    wx = jax.random.normal(kwx, (X_DIM, H), dtype=jnp.float32) * 0.1
    wa = jax.random.normal(kwa, (1, H // 2), dtype=jnp.float32) * 0.1
    wd = jax.random.normal(kwd, (1, H // 2), dtype=jnp.float32) * 0.1
    wfc = jax.random.normal(kwf, (H, 1), dtype=jnp.float32) * 0.1
    bfc = jax.random.normal(kbf, (1,), dtype=jnp.float32) * 0.1
    params = (wx, wa, wd, wfc, bfc)

    # Case 1: tiny shapes (single grid step, tm == M).
    B, N = 2, 8
    x = jax.random.normal(kx, (B, N, X_DIM), dtype=jnp.float32)
    e = jax.random.normal(ke, (B, N, E_DIM), dtype=jnp.float32)
    a = jax.random.normal(ka, (B, N), dtype=jnp.float32)
    d = jax.random.normal(kd, (B, N), dtype=jnp.float32)

    out, xh = agn_forward(x, e, a, d, params)
    jax.block_until_ready(out)
    jax.block_until_ready(xh)
    out_ref, xh_ref = ref_forward(x, e, a, d, params)
    assert jnp.allclose(out, out_ref, atol=1e-5, rtol=1e-5)
    assert jnp.allclose(xh, xh_ref, atol=1e-5, rtol=1e-5)

    # Case 2: exercise the multi-tile path with row padding (M % tm != 0).
    B2, N2 = 3, 70   # M = 210, tm = 64 -> 4 tiles, padded to 256 rows
    x2 = jax.random.normal(kx, (B2, N2, X_DIM), dtype=jnp.float32)
    e2 = jax.random.normal(ke, (B2, N2, E_DIM), dtype=jnp.float32)
    a2 = jax.random.normal(ka, (B2, N2), dtype=jnp.float32)
    d2 = jax.random.normal(kd, (B2, N2), dtype=jnp.float32)

    out2, xh2 = agn_forward(x2, e2, a2, d2, params, tm=64)
    jax.block_until_ready(out2)
    jax.block_until_ready(xh2)
    out2_ref, xh2_ref = ref_forward(x2, e2, a2, d2, params)
    assert jnp.allclose(out2, out2_ref, atol=1e-5, rtol=1e-5)
    assert jnp.allclose(xh2, xh2_ref, atol=1e-5, rtol=1e-5)

    print("KERNEL_OK")
</pallas_src>

<mosaic_0001>
module attributes {stable_mosaic.version = 11 : i64} {
  func.func @agn_fwd_kernel(%arg0: i32, %arg1: memref<3xf32, #tpu.memory_space<smem>>, %arg2: memref<16x6xf32, #tpu.memory_space<vmem>>, %arg3: memref<1x1x16xf32, #tpu.memory_space<vmem>>, %arg4: memref<1x1x16xf32, #tpu.memory_space<vmem>>, %arg5: memref<6x12xf32, #tpu.memory_space<vmem>>, %arg6: memref<1x1x16xf32, #tpu.memory_space<vmem>>, %arg7: memref<16x12xf32, #tpu.memory_space<vmem>>) attributes {dimension_semantics = [#tpu.dimension_semantics<parallel>], iteration_bounds = array<i64: 1>, scalar_prefetch = 0 : i64, scratch_operands = 0 : i64, tpu.core_type = #tpu.core_type<tc>, window_params = [{transform_indices = @transform_0, window_bounds = array<i64: 3>}, {transform_indices = @transform_1, window_bounds = array<i64: 16, 6>}, {transform_indices = @transform_2, window_bounds = array<i64: 1, 1, 16>}, {transform_indices = @transform_3, window_bounds = array<i64: 1, 1, 16>}, {pipeline_mode = #tpu.pipeline_mode<synchronous>, transform_indices = @transform_4, window_bounds = array<i64: 6, 12>}, {transform_indices = @transform_5, window_bounds = array<i64: 1, 1, 16>}, {transform_indices = @transform_6, window_bounds = array<i64: 16, 12>}]} {
    %c0 = arith.constant 0 : index
    %c0_0 = arith.constant 0 : index
    %0 = vector.load %arg2[%c0, %c0_0] : memref<16x6xf32, #tpu.memory_space<vmem>>, vector<16x6xf32>
    %c0_1 = arith.constant 0 : index
    %c0_2 = arith.constant 0 : index
    %1 = vector.load %arg5[%c0_1, %c0_2] : memref<6x12xf32, #tpu.memory_space<vmem>>, vector<6x12xf32>
    %cst = arith.constant dense<0.000000e+00> : vector<16x12xf32>
    %2 = tpu.matmul %0, %1, %cst {dimension_numbers = #tpu.dot_dimension_numbers<[1], [0], [0], [1], [0, 0, 1, 1], [], []>} : vector<16x6xf32>, vector<6x12xf32>, vector<16x12xf32> -> vector<16x12xf32>
    %c0_3 = arith.constant 0 : index
    %c0_4 = arith.constant 0 : index
    %3 = vector.load %arg7[%c0_3, %c0_4] : memref<16x12xf32, #tpu.memory_space<vmem>>, vector<16x12xf32>
    tpu.vector_store %arg7[%c0_3, %c0_4], %2 {strides = array<i32>} : memref<16x12xf32, #tpu.memory_space<vmem>>, vector<16x12xf32>,
    %c0_5 = arith.constant 0 : index
    %4 = memref.load %arg1[%c0_5] : memref<3xf32, #tpu.memory_space<smem>>
    %c1 = arith.constant 1 : index
    %5 = memref.load %arg1[%c1] : memref<3xf32, #tpu.memory_space<smem>>
    %c2 = arith.constant 2 : index
    %6 = memref.load %arg1[%c2] : memref<3xf32, #tpu.memory_space<smem>>
    %c0_6 = arith.constant 0 : index
    %c0_7 = arith.constant 0 : index
    %c0_8 = arith.constant 0 : index
    %7 = vector.load %arg3[%c0_6, %c0_7, %c0_8] : memref<1x1x16xf32, #tpu.memory_space<vmem>>, vector<1x1x16xf32>
    %8 = vector.broadcast %4 : f32 to vector<1x1x16xf32>
    %9 = arith.mulf %7, %8 : vector<1x1x16xf32>
    %c0_9 = arith.constant 0 : index
    %c0_10 = arith.constant 0 : index
    %c0_11 = arith.constant 0 : index
    %10 = vector.load %arg4[%c0_9, %c0_10, %c0_11] : memref<1x1x16xf32, #tpu.memory_space<vmem>>, vector<1x1x16xf32>
    %11 = vector.broadcast %5 : f32 to vector<1x1x16xf32>
    %12 = arith.mulf %10, %11 : vector<1x1x16xf32>
    %13 = arith.addf %9, %12 : vector<1x1x16xf32>
    %14 = vector.broadcast %6 : f32 to vector<1x1x16xf32>
    %15 = arith.addf %13, %14 : vector<1x1x16xf32>
    %c0_12 = arith.constant 0 : index
    %c0_13 = arith.constant 0 : index
    %c0_14 = arith.constant 0 : index
    %16 = vector.load %arg6[%c0_12, %c0_13, %c0_14] : memref<1x1x16xf32, #tpu.memory_space<vmem>>, vector<1x1x16xf32>
    tpu.vector_store %arg6[%c0_12, %c0_13, %c0_14], %15 {strides = array<i32>} : memref<1x1x16xf32, #tpu.memory_space<vmem>>, vector<1x1x16xf32>,
    return
  }
  func.func @transform_0(%arg0: i32) -> i32 {
    %c0_i32 = arith.constant 0 : i32
    %c0_i32_0 = arith.constant 0 : i32
    return %c0_i32 : i32
  }
  func.func @transform_1(%arg0: i32) -> (i32, i32) {
    %c0_i32 = arith.constant 0 : i32
    %c0_i32_0 = arith.constant 0 : i32
    return %arg0, %c0_i32 : i32, i32
  }
  func.func @transform_2(%arg0: i32) -> (i32, i32, i32) {
    %c0_i32 = arith.constant 0 : i32
    %c0_i32_0 = arith.constant 0 : i32
    %c0_i32_1 = arith.constant 0 : i32
    return %arg0, %c0_i32, %c0_i32_0 : i32, i32, i32
  }
  func.func @transform_3(%arg0: i32) -> (i32, i32, i32) {
    %c0_i32 = arith.constant 0 : i32
    %c0_i32_0 = arith.constant 0 : i32
    %c0_i32_1 = arith.constant 0 : i32
    return %arg0, %c0_i32, %c0_i32_0 : i32, i32, i32
  }
  func.func @transform_4(%arg0: i32) -> (i32, i32) {
    %c0_i32 = arith.constant 0 : i32
    %c0_i32_0 = arith.constant 0 : i32
    %c0_i32_1 = arith.constant 0 : i32
    return %c0_i32, %c0_i32_0 : i32, i32
  }
  func.func @transform_5(%arg0: i32) -> (i32, i32, i32) {
    %c0_i32 = arith.constant 0 : i32
    %c0_i32_0 = arith.constant 0 : i32
    %c0_i32_1 = arith.constant 0 : i32
    return %arg0, %c0_i32, %c0_i32_0 : i32, i32, i32
  }
  func.func @transform_6(%arg0: i32) -> (i32, i32) {
    %c0_i32 = arith.constant 0 : i32
    %c0_i32_0 = arith.constant 0 : i32
    return %arg0, %c0_i32 : i32, i32
  }
}

</mosaic_0001>

<llo_original>
// kernel: tpu_custom_call.1
$region0: #{tpu_custom_call.1}
  #allocation0 [shape = 'u32[]', space=smem, size = 0x4, offset = 0x4, fixed_abs, tag = 'smem constant byte address 0x4 - core index']
  #allocation1 [shape = 'u32[144,128]{1,0:T(1,128)}', space=vmem, size = 0x12000, scoped, tag = 'internal scratch']
  %s0 = inlined_call_operand.vmem [shape: f32[3], index: 0, kind: input, shape index: {}]
  %s1 = inlined_call_operand.vmem [shape: f32[16,6], index: 1, kind: input, shape index: {}]
  %s2 = inlined_call_operand.vmem [shape: f32[1,1,16], index: 2, kind: input, shape index: {}]
  %s3 = inlined_call_operand.vmem [shape: f32[1,1,16], index: 3, kind: input, shape index: {}]
  %s4 = inlined_call_operand.vmem [shape: f32[6,12], index: 4, kind: input, shape index: {}]
  %s5 = inlined_call_operand.hbm [shape: f32[1,1,16], index: 5, kind: output, shape index: {0}]
  %s6 = inlined_call_operand.hbm [shape: f32[16,12], index: 6, kind: output, shape index: {1}]
  %7 = xla_tuple %s5, %s6
  %s8 = sld [smem:[#allocation0]]
  $region42: #{tpu_custom_call.1} parent=0
    _
  %s10 = ssub.s32 1, %s8
  %s11 = scalar_select 0, %s10, %s8
  $region1: #{tpu_custom_call.1} parent=0
    #allocation2 [shape = 'u8[512]{0}', space=smem, size = 0x200, scoped, tag = 'input window, operand 0, single buffered']
    #allocation3 [shape = 's32[1]{0}', space=sflag, size = 0x4, scoped, tag = 'scoped memory for tpu_custom_call.1']
    #allocation4 [shape = 's32[1]{0}', space=sflag, size = 0x4, scoped, tag = 'scoped memory for tpu_custom_call.1']
    #allocation5 [shape = 'u8[512]{0}', space=vmem, size = 0x400, scoped, tag = 'output window, operand 0, single buffered']
    #allocation6 [shape = 'u8[8192]{0}', space=vmem, size = 0x2000, scoped, tag = 'output window, operand 1, single buffered']
    #allocation7 [shape = 's32[1]{0}', space=sflag, size = 0x4, scoped, tag = 'scoped memory for tpu_custom_call.1']
    %12 = vsyncpa [#allocation4], 0
    %13 = vsyncpa [#allocation3], 0
    %14 = vsyncpa [#allocation7], 0
    // Predicated region
    $region2: #{tpu_custom_call.1} parent=1 // pred_check
      _
    $region3: #{tpu_custom_call.1} parent=1 // pred_check_branch
      %16 = sbr.rel (0) target = $region5
    $region4: #{tpu_custom_call.1} parent=1 // pred_region
      %s18 = ssub.s32 16, 16
      %19 = vsyncadd [#allocation4], %s18
      %s21 = sshll.u32 %s0, 4
      %s22 = int_to_ptr.vmem [resolvable:$true] %s21
      %24 = dma.vmem_to_smem %s22, 16, [#allocation2], [#allocation4]
    $region5: #{tpu_custom_call.1} parent=1 // pred_fallthru
      _
    // Predicated region
    $region6: #{tpu_custom_call.1} parent=1 // pred_check
      _
    $region7: #{tpu_custom_call.1} parent=1 // pred_check_branch
      %26 = sbr.rel (0) target = $region9
    $region8: #{tpu_custom_call.1} parent=1 // pred_region
      _
    $region9: #{tpu_custom_call.1} parent=1 // pred_fallthru
      _
    // Predicated region
    $region10: #{tpu_custom_call.1} parent=1 // pred_check
      _
    $region11: #{tpu_custom_call.1} parent=1 // pred_check_branch
      %28 = sbr.rel (0) target = $region13
    $region12: #{tpu_custom_call.1} parent=1 // pred_region
      _
    $region13: #{tpu_custom_call.1} parent=1 // pred_fallthru
      _
    // Predicated region
    $region14: #{tpu_custom_call.1} parent=1 // pred_check
      _
    $region15: #{tpu_custom_call.1} parent=1 // pred_check_branch
      %30 = sbr.rel (0) target = $region17
    $region16: #{tpu_custom_call.1} parent=1 // pred_region
      _
    $region17: #{tpu_custom_call.1} parent=1 // pred_fallthru
      _
    // Predicated region
    $region18: #{tpu_custom_call.1} parent=1 // pred_check
      _
    $region19: #{tpu_custom_call.1} parent=1 // pred_check_branch
      %32 = sbr.rel (0) target = $region21
    $region20: #{tpu_custom_call.1} parent=1 // pred_region
      _
    $region21: #{tpu_custom_call.1} parent=1 // pred_fallthru
      _
    // Predicated region
    $region22: #{tpu_custom_call.1} parent=1 // pred_check
      _
    $region23: #{tpu_custom_call.1} parent=1 // pred_check_branch
      %34 = sbr.rel (0) target = $region25
    $region24: #{tpu_custom_call.1} parent=1 // pred_region
      %35 = dma.done [#allocation4], 16
    $region25: #{tpu_custom_call.1} parent=1 // pred_fallthru
      _
    %36 = sfence
    %v37 = vld [vmem:[%s1] sm:$0xff]
    %v38 = vld [vmem:[%s1 + $0x8] sm:$0xff]
    %v39 = vld [vmem:[%s4] sm:$0x3f]
    %vm40 = vcmask 48128
    %v42 = vsel %vm40, %v37, 0
    %v45 = vsel %vm40, %v38, 0
    %vm47 = vcmask 1045504
    %v49 = vsel %vm47, %v39, 0
    %51 = vmatprep.subr.mxu0 0.0
    %52 = vmatpush1.msra.mxu0 0.0
    %53 = vmatprep.subr.mxu0 0.0
    %54 = vmatpush1.msra.mxu0 0.0
    %55 = vmatprep.subr.mxu0 0.0
    %56 = vmatpush1.msra.mxu0 0.0
    %57 = vmatprep.subr.mxu0 0.0
    %58 = vmatpush1.msra.mxu0 0.0
    %59 = vmatprep.subr.mxu0 0.0
    %60 = vmatpush1.msra.mxu0 0.0
    %61 = vmatprep.subr.mxu0 0.0
    %62 = vmatpush1.msra.mxu0 0.0
    %63 = vmatprep.subr.mxu0 0.0
    %64 = vmatpush1.msra.mxu0 0.0
    %65 = vmatprep.subr.mxu0 0.0
    %66 = vmatpush1.msra.mxu0 0.0
    %67 = vmatprep.subr.mxu0 0.0
    %68 = vmatpush1.msra.mxu0 0.0
    %69 = vmatprep.subr.mxu0 0.0
    %70 = vmatpush1.msra.mxu0 0.0
    %71 = vmatprep.subr.mxu0 0.0
    %72 = vmatpush1.msra.mxu0 0.0
    %73 = vmatprep.subr.mxu0 0.0
    %74 = vmatpush1.msra.mxu0 0.0
    %75 = vmatprep.subr.mxu0 0.0
    %76 = vmatpush1.msra.mxu0 0.0
    %77 = vmatprep.subr.mxu0 0.0
    %78 = vmatpush1.msra.mxu0 0.0
    %79 = vmatprep.subr.mxu0 0.0
    %80 = vmatpush1.msra.mxu0 0.0
    %81 = vmatprep.subr.mxu0 0.0
    %82 = vmatpush1.msra.mxu0 %v49
    %83 = vmatprep.subr.mxu0 0.0
    %84 = vmatpush2.msra.mxu0 0.0
    %85 = vmatprep.subr.mxu0 0.0
    %86 = vmatpush2.msra.mxu0 0.0
    %87 = vmatprep.subr.mxu0 0.0
    %88 = vmatpush2.msra.mxu0 0.0
    %89 = vmatprep.subr.mxu0 0.0
    %90 = vmatpush2.msra.mxu0 0.0
    %91 = vmatprep.subr.mxu0 0.0
    %92 = vmatpush2.msra.mxu0 0.0
    %93 = vmatprep.subr.mxu0 0.0
    %94 = vmatpush2.msra.mxu0 0.0
    %95 = vmatprep.subr.mxu0 0.0
    %96 = vmatpush2.msra.mxu0 0.0
    %97 = vmatprep.subr.mxu0 0.0
    %98 = vmatpush2.msra.mxu0 0.0
    %99 = vmatprep.subr.mxu0 0.0
    %100 = vmatpush2.msra.mxu0 0.0
    %101 = vmatprep.subr.mxu0 0.0
    %102 = vmatpush2.msra.mxu0 0.0
    %103 = vmatprep.subr.mxu0 0.0
    %104 = vmatpush2.msra.mxu0 0.0
    %105 = vmatprep.subr.mxu0 0.0
    %106 = vmatpush2.msra.mxu0 0.0
    %107 = vmatprep.subr.mxu0 0.0
    %108 = vmatpush2.msra.mxu0 0.0
    %109 = vmatprep.subr.mxu0 0.0
    %110 = vmatpush2.msra.mxu0 0.0
    %111 = vmatprep.subr.mxu0 0.0
    %112 = vmatpush2.msra.mxu0 0.0
    %113 = vmatprep.subr.mxu0 0.0
    %114 = vmatpush2.msra.mxu0 0.0
    %115 = vmatprep.mubr.f32.mxu0 0.0
    %116 = vmatmul.mubr.f32.gmra.mxu0 %v42
    %v117 = vpop.f32.mrf.mxu0
    %v118 = vadd.f32 0.0, %v117
    %v119 = vpop.f32.mrf.mxu0
    %120 = vmatprep.mubr.f32.mxu0 0.0
    %121 = vmatmul.mubr.f32.gmra.mxu0 %v45
    %v122 = vpop.f32.mrf.mxu0
    %v123 = vadd.f32 0.0, %v122
    %v124 = vpop.f32.mrf.mxu0
    %125 = vdwg.mxu0
    %vm126 = vcmask 97280
    %127 = vst.msk [vmem:[#allocation6] sm:$0xff] %vm126, %v118
    %128 = vst.msk [vmem:[#allocation6 + $0x8] sm:$0xff] %vm126, %v123
    %s129 = sld [smem:[#allocation2]]
    %s130 = sld [smem:[#allocation2 + $0x1]]
    %s131 = sld [smem:[#allocation2 + $0x2]]
    %v132 = vld [vmem:[%s2] sm:$0x1]
    %v133 = vstv %s129
    %v134 = vmul.f32 %v132, %v133
    %v135 = vld [vmem:[%s3] sm:$0x1]
    %v136 = vstv %s130
    %v137 = vmul.f32 %v135, %v136
    %v138 = vadd.f32 %v134, %v137
    %v139 = vstv %s131
    %v140 = vadd.f32 %v138, %v139
    %vm141 = vcmask 122880
    %142 = vst.msk [vmem:[#allocation5] sm:$0x1] %vm141, %v140
    // Predicated region
    $region26: #{tpu_custom_call.1} parent=1 // pred_check
      _
    $region27: #{tpu_custom_call.1} parent=1 // pred_check_branch
      %144 = sbr.rel (0) target = $region29
    $region28: #{tpu_custom_call.1} parent=1 // pred_region
      %s146 = ssub.s32 16, 16
      %147 = vsyncadd [#allocation3], %s146
      %s149 = sshll.u32 [#allocation5], 4
      %s150 = int_to_ptr.vmem [resolvable:$true] %s149
      %152 = dma.vmem_to_hbm [thread:$0]  %s150, 16, %s5, [#allocation3]
    $region29: #{tpu_custom_call.1} parent=1 // pred_fallthru
      _
    // Predicated region
    $region30: #{tpu_custom_call.1} parent=1 // pred_check
      _
    $region31: #{tpu_custom_call.1} parent=1 // pred_check_branch
      %154 = sbr.rel (0) target = $region33
    $region32: #{tpu_custom_call.1} parent=1 // pred_region
      %s156 = ssub.s32 256, 256
      %157 = vsyncadd [#allocation7], %s156
      %s158 = sshll.u32 [#allocation6], 4
      %s159 = int_to_ptr.vmem [resolvable:$true] %s158
      %164 = dma.vmem_to_hbm [thread:$0]  %s159, 256, %s6, [#allocation7], 128, 128, 8
    $region33: #{tpu_custom_call.1} parent=1 // pred_fallthru
      _
    // Predicated region
    $region34: #{tpu_custom_call.1} parent=1 // pred_check
      _
    $region35: #{tpu_custom_call.1} parent=1 // pred_check_branch
      %166 = sbr.rel (0) target = $region37
    $region36: #{tpu_custom_call.1} parent=1 // pred_region
      %167 = dma.done [#allocation3], 16
    $region37: #{tpu_custom_call.1} parent=1 // pred_fallthru
      _
    // Predicated region
    $region38: #{tpu_custom_call.1} parent=1 // pred_check
      _
    $region39: #{tpu_custom_call.1} parent=1 // pred_check_branch
      %169 = sbr.rel (0) target = $region41
    $region40: #{tpu_custom_call.1} parent=1 // pred_region
      %170 = dma.done [#allocation7], 256
    $region41: #{tpu_custom_call.1} parent=1 // pred_fallthru
      _
    %171 = vsyncpa [#allocation3], 1
    %172 = vsyncpa [#allocation7], 1
    %173 = vsyncpa [#allocation4], 1

</llo_original>
